<compile_context>
chip_gen: v5e
topology: v5e:2x2
jax: 0.10.0
libtpu: 0.0.40
codegen_flags: <defaults>
</compile_context>

<pallas_src>
import functools

import jax
import jax.numpy as jnp
from jax.experimental import pallas as pl
from jax.experimental.pallas import tpu as pltpu

STATE_DIM = 8
HIDDEN = 128
ACTION_DIM = 4


def dqn_kernel(x_ref, w1_ref, b1_ref, w2_ref, b2_ref, w3_ref, b3_ref, o_ref):
    # One (TM, STATE_DIM) tile of rows per grid step; fc1 -> ReLU -> fc2 -> ReLU -> fc3.
    # Weights may be bf16 (f32 accumulate via preferred_element_type); biases are f32.
    x = x_ref[...]
    h1 = jnp.dot(x, w1_ref[...], preferred_element_type=jnp.float32) + b1_ref[...]
    h1 = jnp.maximum(h1, 0.0).astype(w2_ref.dtype)
    h2 = jnp.dot(h1, w2_ref[...], preferred_element_type=jnp.float32) + b2_ref[...]
    h2 = jnp.maximum(h2, 0.0).astype(w3_ref.dtype)
    # Narrow (TM, ACTION_DIM) output: last block dim equals the full array dim.
    o_ref[...] = (jnp.dot(h2, w3_ref[...], preferred_element_type=jnp.float32)
                  + b3_ref[...]).astype(o_ref.dtype)


def prepare_params(params, compute_dtype=jnp.bfloat16):
    """One-time layout prep: transpose PyTorch (out,in) weights to (in,out),
    reshape biases to (1,out) f32, and cast weights to the compute dtype
    (bf16 by default for MXU throughput / DMA savings; pass jnp.float32 for
    bit-exact parity with the PyTorch module)."""
    return {
        "w1t": params["w1"].T.astype(compute_dtype),        # (8, 128)
        "b1": params["b1"][None, :].astype(jnp.float32),     # (1, 128)
        "w2t": params["w2"].T.astype(compute_dtype),         # (128, 128)
        "b2": params["b2"][None, :].astype(jnp.float32),     # (1, 128)
        "w3t": params["w3"].T.astype(compute_dtype),         # (128, 4)
        "b3": params["b3"][None, :].astype(jnp.float32),      # (1, 4)
    }


def _next_pow2(n):
    # Bucket batch sizes (>= 8) so the jit cache stays hot across varying
    # replay/eval batch sizes instead of recompiling for every distinct B.
    return 1 << max(3, (n - 1).bit_length())


@functools.partial(jax.jit, static_argnames=("tm",))
def _dqn_forward_padded(x, w1t, b1, w2t, b2, w3t, b3, tm):
    """x: (Bb, STATE_DIM), Bb a power of two >= 8. Returns (Bb, ACTION_DIM) f32."""
    Bb = x.shape[0]
    # Tile selection (all powers of two, so Bb % TM == 0):
    #   tiny batch  -> single tile (step overhead dominates, no point splitting)
    #   medium      -> exactly 2 tiles so v7x's two TensorCores both get work
    #   large       -> fat tm-row tiles
    if Bb <= 512:
        TM = Bb
    elif Bb <= 2 * tm:
        TM = Bb // 2
    else:
        TM = tm
    grid = Bb // TM

    x_bytes = x.dtype.itemsize
    w_bytes = ((w1t.size + w2t.size + w3t.size) * w1t.dtype.itemsize
               + (b1.size + b2.size + b3.size) * 4)
    cost = pl.CostEstimate(
        flops=2 * Bb * (STATE_DIM * HIDDEN + HIDDEN * HIDDEN + HIDDEN * ACTION_DIM),
        transcendentals=0,
        bytes_accessed=Bb * (STATE_DIM * x_bytes + ACTION_DIM * 4) + w_bytes,
    )

    const = lambda i: (0, 0)  # weights/biases: DMA'd once, resident in VMEM
    return pl.pallas_call(
        dqn_kernel,
        out_shape=jax.ShapeDtypeStruct((Bb, ACTION_DIM), jnp.float32),
        grid_spec=pltpu.PrefetchScalarGridSpec(
            num_scalar_prefetch=0,
            grid=(grid,),
            in_specs=[
                pl.BlockSpec((TM, STATE_DIM), lambda i: (i, 0)),  # x tile
                pl.BlockSpec((STATE_DIM, HIDDEN), const),         # w1t
                pl.BlockSpec((1, HIDDEN), const),                 # b1
                pl.BlockSpec((HIDDEN, HIDDEN), const),            # w2t
                pl.BlockSpec((1, HIDDEN), const),                 # b2
                pl.BlockSpec((HIDDEN, ACTION_DIM), const),        # w3t (narrow)
                pl.BlockSpec((1, ACTION_DIM), const),             # b3 (narrow)
            ],
            out_specs=pl.BlockSpec((TM, ACTION_DIM), lambda i: (i, 0)),
        ),
        compiler_params=pltpu.CompilerParams(
            dimension_semantics=("parallel",)),  # shard batch tiles across TCs (v7x)
        cost_estimate=cost,
    )(x, w1t, b1, w2t, b2, w3t, b3)


def dqn_forward(x, prep, tm=4096):
    """x: (B, STATE_DIM) f32. prep: output of prepare_params(). Returns (B, ACTION_DIM) f32."""
    assert tm >= 512 and (tm & (tm - 1)) == 0, "tm must be a power of two >= 512"
    B = x.shape[0]
    Bb = _next_pow2(B)
    x = x.astype(prep["w1t"].dtype)  # bf16 operands on the bf16 path; no-op for f32
    if Bb != B:
        x = jnp.pad(x, ((0, Bb - B), (0, 0)))  # zero rows are inert; sliced off below
    out = _dqn_forward_padded(x, prep["w1t"], prep["b1"], prep["w2t"],
                              prep["b2"], prep["w3t"], prep["b3"], tm=tm)
    return out[:B] if Bb != B else out


def init_params(key):
    """Deterministic init matching PyTorch nn.Linear param shapes."""
    ks = jax.random.split(key, 6)

    def lin(kw, kb, fan_in, fan_out):
        bound = 1.0 / jnp.sqrt(fan_in)
        w = jax.random.uniform(kw, (fan_out, fan_in), jnp.float32, -bound, bound)
        b = jax.random.uniform(kb, (fan_out,), jnp.float32, -bound, bound)
        return w, b

    w1, b1 = lin(ks[0], ks[1], STATE_DIM, HIDDEN)
    w2, b2 = lin(ks[2], ks[3], HIDDEN, HIDDEN)
    w3, b3 = lin(ks[4], ks[5], HIDDEN, ACTION_DIM)
    return {"w1": w1, "b1": b1, "w2": w2, "b2": b2, "w3": w3, "b3": b3}


def reference_forward(x, p):
    """Pure-JAX f32 reference matching the PyTorch module."""
    h1 = jnp.maximum(x @ p["w1"].T + p["b1"], 0.0)
    h2 = jnp.maximum(h1 @ p["w2"].T + p["b2"], 0.0)
    return h2 @ p["w3"].T + p["b3"]


def reference_forward_prep(x, prep):
    """Pure-JAX reference mirroring the kernel's exact dtype sequence (for the bf16 path)."""
    x = x.astype(prep["w1t"].dtype)
    h1 = jnp.maximum(jnp.dot(x, prep["w1t"], preferred_element_type=jnp.float32) + prep["b1"], 0.0)
    h1 = h1.astype(prep["w2t"].dtype)
    h2 = jnp.maximum(jnp.dot(h1, prep["w2t"], preferred_element_type=jnp.float32) + prep["b2"], 0.0)
    h2 = h2.astype(prep["w3t"].dtype)
    return jnp.dot(h2, prep["w3t"], preferred_element_type=jnp.float32) + prep["b3"]


if __name__ == "__main__":
    key = jax.random.PRNGKey(0)
    kx, kp, kx2 = jax.random.split(key, 3)
    params = init_params(kp)

    # --- f32 path: exact semantics of the PyTorch module (small batch, single tile).
    prep_f32 = prepare_params(params, compute_dtype=jnp.float32)
    B = 8
    x = jax.random.normal(kx, (B, STATE_DIM), jnp.float32)
    out = jax.block_until_ready(dqn_forward(x, prep_f32))
    ref = reference_forward(x, params)
    assert out.shape == (B, ACTION_DIM)
    assert jnp.allclose(out, ref, atol=1e-5, rtol=1e-5)

    # --- Ragged batch on the f32 path: exercises bucketing (1037 -> 2048),
    # the 2-tile split (TM=1024, grid=2), and resident weights.
    B2 = 1037
    x2 = jax.random.normal(kx2, (B2, STATE_DIM), jnp.float32)
    out2 = jax.block_until_ready(dqn_forward(x2, prep_f32))
    ref2 = reference_forward(x2, params)
    assert out2.shape == (B2, ACTION_DIM)
    assert jnp.allclose(out2, ref2, atol=1e-5, rtol=1e-5)

    # --- Default bf16-operand path (f32 accumulate): matches a bf16 emulation
    # tightly; deviates slightly from the f32 PyTorch module (documented).
    prep_bf16 = prepare_params(params)  # bf16 weights
    out3 = jax.block_until_ready(dqn_forward(x2, prep_bf16))
    ref3 = reference_forward_prep(x2, prep_bf16)
    assert out3.shape == (B2, ACTION_DIM)
    assert jnp.allclose(out3, ref3, atol=1e-3, rtol=1e-3)
    assert jnp.allclose(out3, ref2, atol=1e-1, rtol=1e-1)  # bf16 vs f32 module: small drift

    print("KERNEL_OK")
</pallas_src>

<mosaic_0001>
module attributes {stable_mosaic.version = 11 : i64} {
  func.func @dqn_kernel(%arg0: i32, %arg1: memref<8x8xf32, #tpu.memory_space<vmem>>, %arg2: memref<8x128xf32, #tpu.memory_space<vmem>>, %arg3: memref<1x128xf32, #tpu.memory_space<vmem>>, %arg4: memref<128x128xf32, #tpu.memory_space<vmem>>, %arg5: memref<1x128xf32, #tpu.memory_space<vmem>>, %arg6: memref<128x4xf32, #tpu.memory_space<vmem>>, %arg7: memref<1x4xf32, #tpu.memory_space<vmem>>, %arg8: memref<8x4xf32, #tpu.memory_space<vmem>>) attributes {dimension_semantics = [#tpu.dimension_semantics<parallel>], iteration_bounds = array<i64: 1>, scalar_prefetch = 0 : i64, scratch_operands = 0 : i64, tpu.core_type = #tpu.core_type<tc>, window_params = [{transform_indices = @transform_0, window_bounds = array<i64: 8, 8>}, {pipeline_mode = #tpu.pipeline_mode<synchronous>, transform_indices = @transform_1, window_bounds = array<i64: 8, 128>}, {pipeline_mode = #tpu.pipeline_mode<synchronous>, transform_indices = @transform_2, window_bounds = array<i64: 1, 128>}, {pipeline_mode = #tpu.pipeline_mode<synchronous>, transform_indices = @transform_3, window_bounds = array<i64: 128, 128>}, {pipeline_mode = #tpu.pipeline_mode<synchronous>, transform_indices = @transform_4, window_bounds = array<i64: 1, 128>}, {pipeline_mode = #tpu.pipeline_mode<synchronous>, transform_indices = @transform_5, window_bounds = array<i64: 128, 4>}, {pipeline_mode = #tpu.pipeline_mode<synchronous>, transform_indices = @transform_6, window_bounds = array<i64: 1, 4>}, {transform_indices = @transform_7, window_bounds = array<i64: 8, 4>}]} {
    %c0 = arith.constant 0 : index
    %c0_0 = arith.constant 0 : index
    %0 = vector.load %arg1[%c0, %c0_0] : memref<8x8xf32, #tpu.memory_space<vmem>>, vector<8x8xf32>
    %c0_1 = arith.constant 0 : index
    %c0_2 = arith.constant 0 : index
    %1 = vector.load %arg2[%c0_1, %c0_2] : memref<8x128xf32, #tpu.memory_space<vmem>>, vector<8x128xf32>
    %cst = arith.constant dense<0.000000e+00> : vector<8x128xf32>
    %2 = tpu.matmul %0, %1, %cst {dimension_numbers = #tpu.dot_dimension_numbers<[1], [0], [0], [1], [0, 0, 1, 1], [], []>} : vector<8x8xf32>, vector<8x128xf32>, vector<8x128xf32> -> vector<8x128xf32>
    %c0_3 = arith.constant 0 : index
    %c0_4 = arith.constant 0 : index
    %3 = vector.load %arg3[%c0_3, %c0_4] : memref<1x128xf32, #tpu.memory_space<vmem>>, vector<1x128xf32>
    %4 = vector.broadcast %3 : vector<1x128xf32> to vector<8x128xf32>
    %5 = arith.addf %2, %4 : vector<8x128xf32>
    %cst_5 = arith.constant 0.000000e+00 : f32
    %6 = vector.broadcast %cst_5 : f32 to vector<8x128xf32>
    %7 = arith.maximumf %5, %6 : vector<8x128xf32>
    %c0_6 = arith.constant 0 : index
    %c0_7 = arith.constant 0 : index
    %8 = vector.load %arg4[%c0_6, %c0_7] : memref<128x128xf32, #tpu.memory_space<vmem>>, vector<128x128xf32>
    %cst_8 = arith.constant dense<0.000000e+00> : vector<8x128xf32>
    %9 = tpu.matmul %7, %8, %cst_8 {dimension_numbers = #tpu.dot_dimension_numbers<[1], [0], [0], [1], [0, 0, 1, 1], [], []>} : vector<8x128xf32>, vector<128x128xf32>, vector<8x128xf32> -> vector<8x128xf32>
    %c0_9 = arith.constant 0 : index
    %c0_10 = arith.constant 0 : index
    %10 = vector.load %arg5[%c0_9, %c0_10] : memref<1x128xf32, #tpu.memory_space<vmem>>, vector<1x128xf32>
    %11 = vector.broadcast %10 : vector<1x128xf32> to vector<8x128xf32>
    %12 = arith.addf %9, %11 : vector<8x128xf32>
    %cst_11 = arith.constant 0.000000e+00 : f32
    %13 = vector.broadcast %cst_11 : f32 to vector<8x128xf32>
    %14 = arith.maximumf %12, %13 : vector<8x128xf32>
    %c0_12 = arith.constant 0 : index
    %c0_13 = arith.constant 0 : index
    %15 = vector.load %arg6[%c0_12, %c0_13] : memref<128x4xf32, #tpu.memory_space<vmem>>, vector<128x4xf32>
    %cst_14 = arith.constant dense<0.000000e+00> : vector<8x4xf32>
    %16 = tpu.matmul %14, %15, %cst_14 {dimension_numbers = #tpu.dot_dimension_numbers<[1], [0], [0], [1], [0, 0, 1, 1], [], []>} : vector<8x128xf32>, vector<128x4xf32>, vector<8x4xf32> -> vector<8x4xf32>
    %c0_15 = arith.constant 0 : index
    %c0_16 = arith.constant 0 : index
    %17 = vector.load %arg7[%c0_15, %c0_16] : memref<1x4xf32, #tpu.memory_space<vmem>>, vector<1x4xf32>
    %18 = vector.broadcast %17 : vector<1x4xf32> to vector<8x4xf32>
    %19 = arith.addf %16, %18 : vector<8x4xf32>
    %c0_17 = arith.constant 0 : index
    %c0_18 = arith.constant 0 : index
    %20 = vector.load %arg8[%c0_17, %c0_18] : memref<8x4xf32, #tpu.memory_space<vmem>>, vector<8x4xf32>
    tpu.vector_store %arg8[%c0_17, %c0_18], %19 {strides = array<i32>} : memref<8x4xf32, #tpu.memory_space<vmem>>, vector<8x4xf32>,
    return
  }
  func.func @transform_0(%arg0: i32) -> (i32, i32) {
    %c0_i32 = arith.constant 0 : i32
    %c0_i32_0 = arith.constant 0 : i32
    return %arg0, %c0_i32 : i32, i32
  }
  func.func @transform_1(%arg0: i32) -> (i32, i32) {
    %c0_i32 = arith.constant 0 : i32
    %c0_i32_0 = arith.constant 0 : i32
    %c0_i32_1 = arith.constant 0 : i32
    return %c0_i32, %c0_i32_0 : i32, i32
  }
  func.func @transform_2(%arg0: i32) -> (i32, i32) {
    %c0_i32 = arith.constant 0 : i32
    %c0_i32_0 = arith.constant 0 : i32
    %c0_i32_1 = arith.constant 0 : i32
    return %c0_i32, %c0_i32_0 : i32, i32
  }
  func.func @transform_3(%arg0: i32) -> (i32, i32) {
    %c0_i32 = arith.constant 0 : i32
    %c0_i32_0 = arith.constant 0 : i32
    %c0_i32_1 = arith.constant 0 : i32
    return %c0_i32, %c0_i32_0 : i32, i32
  }
  func.func @transform_4(%arg0: i32) -> (i32, i32) {
    %c0_i32 = arith.constant 0 : i32
    %c0_i32_0 = arith.constant 0 : i32
    %c0_i32_1 = arith.constant 0 : i32
    return %c0_i32, %c0_i32_0 : i32, i32
  }
  func.func @transform_5(%arg0: i32) -> (i32, i32) {
    %c0_i32 = arith.constant 0 : i32
    %c0_i32_0 = arith.constant 0 : i32
    %c0_i32_1 = arith.constant 0 : i32
    return %c0_i32, %c0_i32_0 : i32, i32
  }
  func.func @transform_6(%arg0: i32) -> (i32, i32) {
    %c0_i32 = arith.constant 0 : i32
    %c0_i32_0 = arith.constant 0 : i32
    %c0_i32_1 = arith.constant 0 : i32
    return %c0_i32, %c0_i32_0 : i32, i32
  }
  func.func @transform_7(%arg0: i32) -> (i32, i32) {
    %c0_i32 = arith.constant 0 : i32
    %c0_i32_0 = arith.constant 0 : i32
    return %arg0, %c0_i32 : i32, i32
  }
}

</mosaic_0001>

<llo_original>
// kernel: _dqn_forward_padded.1
$region0: #{_dqn_forward_padded.1}
  #allocation0 [shape = 'u32[]', space=smem, size = 0x4, offset = 0x4, fixed_abs, tag = 'smem constant byte address 0x4 - core index']
  #allocation1 [shape = 'u32[72,128]{1,0:T(1,128)}', space=vmem, size = 0x9000, scoped, tag = 'internal scratch']
  %s0 = inlined_call_operand.hbm [shape: f32[8,8], index: 0, kind: input, shape index: {}]
  %s1 = inlined_call_operand.hbm [shape: f32[8,128], index: 1, kind: input, shape index: {}]
  %s2 = inlined_call_operand.vmem [shape: f32[1,128], index: 2, kind: input, shape index: {}]
  %s3 = inlined_call_operand.vmem [shape: f32[128,128], index: 3, kind: input, shape index: {}]
  %s4 = inlined_call_operand.vmem [shape: f32[1,128], index: 4, kind: input, shape index: {}]
  %s5 = inlined_call_operand.vmem [shape: f32[128,4], index: 5, kind: input, shape index: {}]
  %s6 = inlined_call_operand.vmem [shape: f32[1,4], index: 6, kind: input, shape index: {}]
  %s7 = inlined_call_operand.vmem [shape: f32[8,4], index: 7, kind: output, shape index: {}]
  %s8 = sld [smem:[#allocation0]]
  $region46: #{_dqn_forward_padded.1} parent=0
    _
  %s10 = ssub.s32 1, %s8
  %s11 = scalar_select 0, %s10, %s8
  $region1: #{_dqn_forward_padded.1} parent=0
    #allocation2 [shape = 'u8[4096]{0}', space=vmem, size = 0x1000, scoped, tag = 'input window, operand 0, single buffered']
    #allocation3 [shape = 's32[1]{0}', space=sflag, size = 0x4, scoped, tag = 'scoped memory for _dqn_forward_padded.1']
    #allocation4 [shape = 'u8[4096]{0}', space=vmem, size = 0x1000, scoped, tag = 'input window, operand 1, single buffered']
    #allocation5 [shape = 's32[1]{0}', space=sflag, size = 0x4, scoped, tag = 'scoped memory for _dqn_forward_padded.1']
    %12 = vsyncpa [#allocation3], 0
    %13 = vsyncpa [#allocation5], 0
    // Predicated region
    $region2: #{_dqn_forward_padded.1} parent=1 // pred_check
      _
    $region3: #{_dqn_forward_padded.1} parent=1 // pred_check_branch
      %15 = sbr.rel (0) target = $region5
    $region4: #{_dqn_forward_padded.1} parent=1 // pred_region
      %17 = vsyncadd [#allocation3], 0
      %s19 = sshll.u32 %s0, 4
      %s20 = int_to_ptr.hbm [resolvable:$true] %s19
      %s21 = sshll.u32 [#allocation2], 4
      %s22 = int_to_ptr.vmem [resolvable:$true] %s21
      %24 = dma.hbm_to_vmem [thread:$0]  %s20, 128, %s22, [#allocation3]
    $region5: #{_dqn_forward_padded.1} parent=1 // pred_fallthru
      _
    // Predicated region
    $region6: #{_dqn_forward_padded.1} parent=1 // pred_check
      _
    $region7: #{_dqn_forward_padded.1} parent=1 // pred_check_branch
      %26 = sbr.rel (0) target = $region9
    $region8: #{_dqn_forward_padded.1} parent=1 // pred_region
      %28 = vsyncadd [#allocation5], 0
      %s30 = sshll.u32 %s1, 4
      %s31 = int_to_ptr.hbm [resolvable:$true] %s30
      %s32 = sshll.u32 [#allocation4], 4
      %s33 = int_to_ptr.vmem [resolvable:$true] %s32
      %35 = dma.hbm_to_vmem [thread:$0]  %s31, 128, %s33, [#allocation5]
    $region9: #{_dqn_forward_padded.1} parent=1 // pred_fallthru
      _
    // Predicated region
    $region10: #{_dqn_forward_padded.1} parent=1 // pred_check
      _
    $region11: #{_dqn_forward_padded.1} parent=1 // pred_check_branch
      %37 = sbr.rel (0) target = $region13
    $region12: #{_dqn_forward_padded.1} parent=1 // pred_region
      _
    $region13: #{_dqn_forward_padded.1} parent=1 // pred_fallthru
      _
    // Predicated region
    $region14: #{_dqn_forward_padded.1} parent=1 // pred_check
      _
    $region15: #{_dqn_forward_padded.1} parent=1 // pred_check_branch
      %39 = sbr.rel (0) target = $region17
    $region16: #{_dqn_forward_padded.1} parent=1 // pred_region
      _
    $region17: #{_dqn_forward_padded.1} parent=1 // pred_fallthru
      _
    // Predicated region
    $region18: #{_dqn_forward_padded.1} parent=1 // pred_check
      _
    $region19: #{_dqn_forward_padded.1} parent=1 // pred_check_branch
      %41 = sbr.rel (0) target = $region21
    $region20: #{_dqn_forward_padded.1} parent=1 // pred_region
      _
    $region21: #{_dqn_forward_padded.1} parent=1 // pred_fallthru
      _
    // Predicated region
    $region22: #{_dqn_forward_padded.1} parent=1 // pred_check
      _
    $region23: #{_dqn_forward_padded.1} parent=1 // pred_check_branch
      %43 = sbr.rel (0) target = $region25
    $region24: #{_dqn_forward_padded.1} parent=1 // pred_region
      _
    $region25: #{_dqn_forward_padded.1} parent=1 // pred_fallthru
      _
    // Predicated region
    $region26: #{_dqn_forward_padded.1} parent=1 // pred_check
      _
    $region27: #{_dqn_forward_padded.1} parent=1 // pred_check_branch
      %45 = sbr.rel (0) target = $region29
    $region28: #{_dqn_forward_padded.1} parent=1 // pred_region
      _
    $region29: #{_dqn_forward_padded.1} parent=1 // pred_fallthru
      _
    // Predicated region
    $region30: #{_dqn_forward_padded.1} parent=1 // pred_check
      _
    $region31: #{_dqn_forward_padded.1} parent=1 // pred_check_branch
      %47 = sbr.rel (0) target = $region33
    $region32: #{_dqn_forward_padded.1} parent=1 // pred_region
      %49 = dma.done [#allocation3], 128
    $region33: #{_dqn_forward_padded.1} parent=1 // pred_fallthru
      _
    // Predicated region
    $region34: #{_dqn_forward_padded.1} parent=1 // pred_check
      _
    $region35: #{_dqn_forward_padded.1} parent=1 // pred_check_branch
      %51 = sbr.rel (0) target = $region37
    $region36: #{_dqn_forward_padded.1} parent=1 // pred_region
      %53 = dma.done [#allocation5], 128
    $region37: #{_dqn_forward_padded.1} parent=1 // pred_fallthru
      _
    %v54 = vld [vmem:[#allocation2] sm:$0xff]
    %v55 = vld [vmem:[#allocation4] sm:$0xff]
    %v56 = vld [vmem:[%s2] sm:$0x1]
    %v58 = vperm.slane %v56, 0
    %vm60 = vcmask 64512
    %v62 = vsel %vm60, %v54, 0
    %64 = vmatpush.msra.mxu0 0.0
    %65 = vmatpush.msra.mxu0 0.0
    %66 = vmatpush.msra.mxu0 0.0
    %67 = vmatpush.msra.mxu0 0.0
    %68 = vmatpush.msra.mxu0 0.0
    %69 = vmatpush.msra.mxu0 0.0
    %70 = vmatpush.msra.mxu0 0.0
    %71 = vmatpush.msra.mxu0 0.0
    %72 = vmatpush.msra.mxu0 0.0
    %73 = vmatpush.msra.mxu0 0.0
    %74 = vmatpush.msra.mxu0 0.0
    %75 = vmatpush.msra.mxu0 0.0
    %76 = vmatpush.msra.mxu0 0.0
    %77 = vmatpush.msra.mxu0 0.0
    %78 = vmatpush.msra.mxu0 0.0
    %79 = vmatpush.msra.mxu0 %v55
    %80 = vmatmul.f32.gmra.mxu0 %v62
    %v81 = vpop.f32.mrf.mxu0
    %v82 = vadd.f32 %v58, %v81
    %83 = vdwg.mxu0
    %v84 = vmax.f32 %v82, 0.0
    %v85 = vld [vmem:[%s3] sm:$0xff]
    %v86 = vld [vmem:[%s3 + $0x8] sm:$0xff]
    %v87 = vld [vmem:[%s3 + $0x10] sm:$0xff]
    %v88 = vld [vmem:[%s3 + $0x18] sm:$0xff]
    %v89 = vld [vmem:[%s3 + $0x20] sm:$0xff]
    %v90 = vld [vmem:[%s3 + $0x28] sm:$0xff]
    %v91 = vld [vmem:[%s3 + $0x30] sm:$0xff]
    %v92 = vld [vmem:[%s3 + $0x38] sm:$0xff]
    %v93 = vld [vmem:[%s3 + $0x40] sm:$0xff]
    %v94 = vld [vmem:[%s3 + $0x48] sm:$0xff]
    %v95 = vld [vmem:[%s3 + $0x50] sm:$0xff]
    %v96 = vld [vmem:[%s3 + $0x58] sm:$0xff]
    %v97 = vld [vmem:[%s3 + $0x60] sm:$0xff]
    %v98 = vld [vmem:[%s3 + $0x68] sm:$0xff]
    %v99 = vld [vmem:[%s3 + $0x70] sm:$0xff]
    %v100 = vld [vmem:[%s3 + $0x78] sm:$0xff]
    %v101 = vld [vmem:[%s4] sm:$0x1]
    %v103 = vperm.slane %v101, 0
    %105 = vmatpush.msra.mxu0 %v100
    %106 = vmatpush.msra.mxu0 %v99
    %107 = vmatpush.msra.mxu0 %v98
    %108 = vmatpush.msra.mxu0 %v97
    %109 = vmatpush.msra.mxu0 %v96
    %110 = vmatpush.msra.mxu0 %v95
    %111 = vmatpush.msra.mxu0 %v94
    %112 = vmatpush.msra.mxu0 %v93
    %113 = vmatpush.msra.mxu0 %v92
    %114 = vmatpush.msra.mxu0 %v91
    %115 = vmatpush.msra.mxu0 %v90
    %116 = vmatpush.msra.mxu0 %v89
    %117 = vmatpush.msra.mxu0 %v88
    %118 = vmatpush.msra.mxu0 %v87
    %119 = vmatpush.msra.mxu0 %v86
    %120 = vmatpush.msra.mxu0 %v85
    %121 = vmatmul.f32.gmra.mxu0 %v84
    %v122 = vpop.f32.mrf.mxu0
    %v123 = vadd.f32 %v103, %v122
    %124 = vdwg.mxu0
    %v125 = vmax.f32 %v123, 0.0
    %v126 = vld [vmem:[%s5] sm:$0xff]
    %v127 = vld [vmem:[%s5 + $0x8] sm:$0xff]
    %v128 = vld [vmem:[%s5 + $0x10] sm:$0xff]
    %v129 = vld [vmem:[%s5 + $0x18] sm:$0xff]
    %v130 = vld [vmem:[%s5 + $0x20] sm:$0xff]
    %v131 = vld [vmem:[%s5 + $0x28] sm:$0xff]
    %v132 = vld [vmem:[%s5 + $0x30] sm:$0xff]
    %v133 = vld [vmem:[%s5 + $0x38] sm:$0xff]
    %v134 = vld [vmem:[%s5 + $0x40] sm:$0xff]
    %v135 = vld [vmem:[%s5 + $0x48] sm:$0xff]
    %v136 = vld [vmem:[%s5 + $0x50] sm:$0xff]
    %v137 = vld [vmem:[%s5 + $0x58] sm:$0xff]
    %v138 = vld [vmem:[%s5 + $0x60] sm:$0xff]
    %v139 = vld [vmem:[%s5 + $0x68] sm:$0xff]
    %v140 = vld [vmem:[%s5 + $0x70] sm:$0xff]
    %v141 = vld [vmem:[%s5 + $0x78] sm:$0xff]
    %v142 = vld [vmem:[%s6] sm:$0x1]
    %v144 = vperm.slane %v142, 0
    %146 = vmatpush.msra.mxu0 %v141
    %147 = vmatpush.msra.mxu0 %v140
    %148 = vmatpush.msra.mxu0 %v139
    %149 = vmatpush.msra.mxu0 %v138
    %150 = vmatpush.msra.mxu0 %v137
    %151 = vmatpush.msra.mxu0 %v136
    %152 = vmatpush.msra.mxu0 %v135
    %153 = vmatpush.msra.mxu0 %v134
    %154 = vmatpush.msra.mxu0 %v133
    %155 = vmatpush.msra.mxu0 %v132
    %156 = vmatpush.msra.mxu0 %v131
    %157 = vmatpush.msra.mxu0 %v130
    %158 = vmatpush.msra.mxu0 %v129
    %159 = vmatpush.msra.mxu0 %v128
    %160 = vmatpush.msra.mxu0 %v127
    %161 = vmatpush.msra.mxu0 %v126
    %162 = vmatmul.f32.gmra.mxu0 %v125
    %v163 = vpop.f32.mrf.mxu0
    %v164 = vadd.f32 %v144, %v163
    %165 = vdwg.mxu0
    %vm166 = vcmask 31744
    %167 = vst.msk [vmem:[%s7] sm:$0xff] %vm166, %v164
    // Predicated region
    $region38: #{_dqn_forward_padded.1} parent=1 // pred_check
      _
    $region39: #{_dqn_forward_padded.1} parent=1 // pred_check_branch
      %169 = sbr.rel (0) target = $region41
    $region40: #{_dqn_forward_padded.1} parent=1 // pred_region
      _
    $region41: #{_dqn_forward_padded.1} parent=1 // pred_fallthru
      _
    // Predicated region
    $region42: #{_dqn_forward_padded.1} parent=1 // pred_check
      _
    $region43: #{_dqn_forward_padded.1} parent=1 // pred_check_branch
      %171 = sbr.rel (0) target = $region45
    $region44: #{_dqn_forward_padded.1} parent=1 // pred_region
      _
    $region45: #{_dqn_forward_padded.1} parent=1 // pred_fallthru
      _
    %172 = vsyncpa [#allocation3], 1
    %173 = vsyncpa [#allocation5], 1

</llo_original>
